<compile_context>
chip_gen: v6e
topology: v6e:2x2x1
jax: 0.10.0
libtpu: 0.0.40
codegen_flags: <defaults>
</compile_context>

<pallas_src>
import jax
import jax.numpy as jnp
from jax.experimental import pallas as pl
from jax.experimental.pallas import tpu as pltpu


def _pos_enc_kernel(x_ref, pos_ref, o_ref):
    # x_ref: (tb, tl); pos_ref: (1, tl) -> sublane-broadcast add on the VPU.
    o_ref[...] = (x_ref[...] + pos_ref[...]).astype(o_ref.dtype)


def positional_encoding(
    x: jax.Array,
    pos_emb: jax.Array,
    *,
    target_tile_bytes: int = 4 * 1024 * 1024,   # ~4 MiB x-tile (review: v6e/v7x sweet spot)
    min_pallas_bytes: int = 256 * 1024,          # below this, plain XLA add is faster
    donate_x: bool = False,                      # alias x's buffer for the output
) -> jax.Array:
    """x: (B, J, D); pos_emb: (1, J, D) -> (B, J, D) = x + pos_emb."""
    B, J, D = x.shape
    assert pos_emb.shape == (1, J, D), (pos_emb.shape, (1, J, D))

    L = J * D
    itemsize = jnp.dtype(x.dtype).itemsize
    total_bytes = B * L * itemsize

    # Tiny inputs: pallas_call launch + pipeline prologue dwarfs the data
    # movement, and a standalone kernel blocks XLA fusion. Just add.
    if total_bytes <= min_pallas_bytes:
        return x + pos_emb.astype(x.dtype)

    # Lane-dense collapsed layout (contiguous reshape).
    x2 = x.reshape(B, L)
    p2 = pos_emb.reshape(1, L)

    # --- Tile sizing (byte-budgeted) -------------------------------------
    row_bytes = L * itemsize
    rows = max(1, target_tile_bytes // row_bytes)

    if rows >= B:
        tb, tl = B, L                               # whole batch fits in one tile
    elif rows >= 8:
        tb, tl = (rows // 8) * 8, L                 # multiple-of-8 sublane tiles
    else:
        # A single 8-row group exceeds the budget: tile the lane axis too,
        # keeping tl a multiple of 128 so stores stay unmasked.
        tb = min(B, 8)
        tl = max(128, (target_tile_bytes // (tb * itemsize)) // 128 * 128)
        tl = min(tl, L)

    # Megacore (v7x has 2 TCs): ensure >=2 grid steps for non-tiny problems
    # that would otherwise collapse to a single tile.
    if tb >= B and tl >= L and B > 8:
        tb = ((pl.cdiv(B, 2) + 7) // 8) * 8

    grid = (pl.cdiv(B, tb), pl.cdiv(L, tl))

    compiler_params = pltpu.CompilerParams(
        dimension_semantics=("parallel", "parallel"),
        # Explicit so v5e (16 MiB default scoped VMEM) fits the double-buffered
        # 4 MiB x/out tiles; well under every chip's physical VMEM.
        vmem_limit_bytes=32 * 1024 * 1024,
    )

    kwargs = {}
    if donate_x:
        # Output reuses x's HBM buffer (caller must donate x).
        kwargs["input_output_aliases"] = {0: 0}

    out2 = pl.pallas_call(
        _pos_enc_kernel,
        out_shape=jax.ShapeDtypeStruct((B, L), x.dtype),
        grid=grid,
        in_specs=[
            pl.BlockSpec((tb, tl), lambda b, l: (b, l)),   # x: (tb, tl) tile per step
            pl.BlockSpec((1, tl), lambda b, l: (0, l)),    # pos: resident across batch
        ],
        out_specs=pl.BlockSpec((tb, tl), lambda b, l: (b, l)),
        compiler_params=compiler_params,
        **kwargs,
    )(x2, p2)
    return out2.reshape(B, J, D)


if __name__ == "__main__":
    key = jax.random.PRNGKey(0)
    k_x, k_pos, k_x2, k_pos2 = jax.random.split(key, 4)

    # --- Test 1: module-sized shapes (batch=2, num_joints=8, embed=32) ----
    B, J, D = 2, 8, 32
    x = jax.random.normal(k_x, (B, J, D), dtype=jnp.float32)
    # nn.Parameter(torch.rand(...)) -> uniform [0, 1); deterministic init here.
    pos_emb = jax.random.uniform(k_pos, (1, J, D), dtype=jnp.float32)

    # min_pallas_bytes=0 forces the Pallas path even at this tiny size so the
    # kernel itself is exercised (default behaviour would early-exit to XLA).
    out = positional_encoding(x, pos_emb, min_pallas_bytes=0)
    out = jax.block_until_ready(out)
    ref = x + pos_emb
    assert out.shape == (B, J, D)
    assert out.dtype == x.dtype
    assert jnp.allclose(out, ref, atol=1e-6, rtol=1e-6)

    # --- Test 2: L not a multiple of 128 + remainder batch tile -----------
    B2, J2, D2 = 18, 25, 64   # L = 1600 (not 128-aligned), grid splits batch in 2
    x_b = jax.random.normal(k_x2, (B2, J2, D2), dtype=jnp.float32)
    pos_b = jax.random.uniform(k_pos2, (1, J2, D2), dtype=jnp.float32)
    out_b = positional_encoding(x_b, pos_b, min_pallas_bytes=0)
    out_b = jax.block_until_ready(out_b)
    assert jnp.allclose(out_b, x_b + pos_b, atol=1e-6, rtol=1e-6)

    print("KERNEL_OK")
</pallas_src>

<mosaic_0001>
module attributes {stable_mosaic.version = 11 : i64} {
  func.func @_pos_enc_kernel(%arg0: i32, %arg1: i32, %arg2: memref<2x256xf32, #tpu.memory_space<vmem>>, %arg3: memref<1x256xf32, #tpu.memory_space<vmem>>, %arg4: memref<2x256xf32, #tpu.memory_space<vmem>>) attributes {dimension_semantics = [#tpu.dimension_semantics<parallel>, #tpu.dimension_semantics<parallel>], iteration_bounds = array<i64: 1, 1>, scalar_prefetch = 0 : i64, scratch_operands = 0 : i64, tpu.core_type = #tpu.core_type<tc>, window_params = [{transform_indices = @transform_0, window_bounds = array<i64: 2, 256>}, {transform_indices = @transform_1, window_bounds = array<i64: 1, 256>}, {transform_indices = @transform_2, window_bounds = array<i64: 2, 256>}]} {
    %c0 = arith.constant 0 : index
    %c0_0 = arith.constant 0 : index
    %0 = vector.load %arg2[%c0, %c0_0] : memref<2x256xf32, #tpu.memory_space<vmem>>, vector<2x256xf32>
    %c0_1 = arith.constant 0 : index
    %c0_2 = arith.constant 0 : index
    %1 = vector.load %arg3[%c0_1, %c0_2] : memref<1x256xf32, #tpu.memory_space<vmem>>, vector<1x256xf32>
    %2 = vector.broadcast %1 : vector<1x256xf32> to vector<2x256xf32>
    %3 = arith.addf %0, %2 : vector<2x256xf32>
    %c0_3 = arith.constant 0 : index
    %c0_4 = arith.constant 0 : index
    %4 = vector.load %arg4[%c0_3, %c0_4] : memref<2x256xf32, #tpu.memory_space<vmem>>, vector<2x256xf32>
    tpu.vector_store %arg4[%c0_3, %c0_4], %3 {strides = array<i32>} : memref<2x256xf32, #tpu.memory_space<vmem>>, vector<2x256xf32>,
    return
  }
  func.func @transform_0(%arg0: i32, %arg1: i32) -> (i32, i32) {
    %c0_i32 = arith.constant 0 : i32
    return %arg0, %arg1 : i32, i32
  }
  func.func @transform_1(%arg0: i32, %arg1: i32) -> (i32, i32) {
    %c0_i32 = arith.constant 0 : i32
    %c0_i32_0 = arith.constant 0 : i32
    return %c0_i32, %arg1 : i32, i32
  }
  func.func @transform_2(%arg0: i32, %arg1: i32) -> (i32, i32) {
    %c0_i32 = arith.constant 0 : i32
    return %arg0, %arg1 : i32, i32
  }
}

</mosaic_0001>

<llo_original>
// kernel: tpu_custom_call.1
$region0: #{tpu_custom_call.1}
  #allocation0 [shape = 'u32[]', space=smem, size = 0x4, offset = 0x4, fixed_abs, tag = 'smem constant byte address 0x4 - core index']
  #allocation1 [shape = 'u32[144,128]{1,0:T(1,128)}', space=vmem, size = 0x12000, scoped, tag = 'internal scratch']
  %s0 = inlined_call_operand.hbm [shape: f32[2,256], index: 0, kind: input, shape index: {}]
  %s1 = inlined_call_operand.hbm [shape: f32[1,256], index: 1, kind: input, shape index: {}]
  %s2 = inlined_call_operand.hbm [shape: f32[2,256], index: 2, kind: output, shape index: {}]
  %s3 = sld [smem:[#allocation0]]
  $region26: #{tpu_custom_call.1} parent=0
    _
  %s5 = ssub.s32 1, %s3
  %s6 = scalar_select 0, %s5, %s3
  $region1: #{tpu_custom_call.1} parent=0
    #allocation2 [shape = 'u8[2048]{0}', space=vmem, size = 0x800, scoped, tag = 'input window, operand 0, single buffered']
    #allocation3 [shape = 's32[1]{0}', space=sflag, size = 0x4, scoped, tag = 'scoped memory for tpu_custom_call.1']
    #allocation4 [shape = 's32[1]{0}', space=sflag, size = 0x4, scoped, tag = 'scoped memory for tpu_custom_call.1']
    #allocation5 [shape = 'u8[1024]{0}', space=vmem, size = 0x400, scoped, tag = 'input window, operand 1, single buffered']
    #allocation6 [shape = 's32[1]{0}', space=sflag, size = 0x4, scoped, tag = 'scoped memory for tpu_custom_call.1']
    #allocation7 [shape = 'u8[2048]{0}', space=vmem, size = 0x800, scoped, tag = 'output window, operand 0, single buffered']
    %7 = vsyncpa [#allocation3], 0
    %8 = vsyncpa [#allocation6], 0
    %9 = vsyncpa [#allocation4], 0
    // Predicated region
    $region2: #{tpu_custom_call.1} parent=1 // pred_check
      _
    $region3: #{tpu_custom_call.1} parent=1 // pred_check_branch
      %11 = sbr.rel (0) target = $region5
    $region4: #{tpu_custom_call.1} parent=1 // pred_region
      %s13 = ssub.s32 64, 64
      %14 = vsyncadd [#allocation3], %s13
      %s16 = sshll.u32 [#allocation2], 4
      %s17 = int_to_ptr.vmem [resolvable:$true] %s16
      %19 = dma.hbm_to_vmem [thread:$0]  %s0, 64, %s17, [#allocation3]
    $region5: #{tpu_custom_call.1} parent=1 // pred_fallthru
      _
    // Predicated region
    $region6: #{tpu_custom_call.1} parent=1 // pred_check
      _
    $region7: #{tpu_custom_call.1} parent=1 // pred_check_branch
      %21 = sbr.rel (0) target = $region9
    $region8: #{tpu_custom_call.1} parent=1 // pred_region
      %s23 = ssub.s32 32, 32
      %24 = vsyncadd [#allocation6], %s23
      %s26 = sshll.u32 [#allocation5], 4
      %s27 = int_to_ptr.vmem [resolvable:$true] %s26
      %29 = dma.hbm_to_vmem [thread:$0]  %s1, 32, %s27, [#allocation6]
    $region9: #{tpu_custom_call.1} parent=1 // pred_fallthru
      _
    // Predicated region
    $region10: #{tpu_custom_call.1} parent=1 // pred_check
      _
    $region11: #{tpu_custom_call.1} parent=1 // pred_check_branch
      %31 = sbr.rel (0) target = $region13
    $region12: #{tpu_custom_call.1} parent=1 // pred_region
      %32 = dma.done [#allocation3], 64
    $region13: #{tpu_custom_call.1} parent=1 // pred_fallthru
      _
    // Predicated region
    $region14: #{tpu_custom_call.1} parent=1 // pred_check
      _
    $region15: #{tpu_custom_call.1} parent=1 // pred_check_branch
      %34 = sbr.rel (0) target = $region17
    $region16: #{tpu_custom_call.1} parent=1 // pred_region
      %35 = dma.done [#allocation6], 32
    $region17: #{tpu_custom_call.1} parent=1 // pred_fallthru
      _
    %v36 = vld [vmem:[#allocation2] sm:$0xf]
    %v37 = vld [vmem:[#allocation5] sm:$0x3]
    %v39 = vlaneseq
    %v40 = vshrl.u32 %v39, 7
    %v41 = vsub.s32 0, %v40
    %v42 = vrot.slane %v37, %v41
    %v43 = vlaneseq
    %v44 = vshrl.u32 %v43, 7
    %v45 = vsub.s32 1, %v44
    %v46 = vrot.slane %v37, %v45
    %v47 = vcombine.low %v42, %v46
    %v49 = vunpack.c.l.s4 1983009808
    %v50 = vunpack.c.0.s8 %v49
    %v51 = vlaneseq
    %v52 = vshrl.u32 %v51, 7
    %v53 = vsub.s32 %v50, %v52
    %v54 = vrot.slane %v47, %v53
    %v56 = vadd.f32 %v36, %v54
    %57 = vst [vmem:[#allocation7] sm:$0xf] %v56
    // Predicated region
    $region18: #{tpu_custom_call.1} parent=1 // pred_check
      _
    $region19: #{tpu_custom_call.1} parent=1 // pred_check_branch
      %59 = sbr.rel (0) target = $region21
    $region20: #{tpu_custom_call.1} parent=1 // pred_region
      %s61 = ssub.s32 64, 64
      %62 = vsyncadd [#allocation4], %s61
      %s64 = sshll.u32 [#allocation7], 4
      %s65 = int_to_ptr.vmem [resolvable:$true] %s64
      %67 = dma.vmem_to_hbm [thread:$0]  %s65, 64, %s2, [#allocation4]
    $region21: #{tpu_custom_call.1} parent=1 // pred_fallthru
      _
    // Predicated region
    $region22: #{tpu_custom_call.1} parent=1 // pred_check
      _
    $region23: #{tpu_custom_call.1} parent=1 // pred_check_branch
      %69 = sbr.rel (0) target = $region25
    $region24: #{tpu_custom_call.1} parent=1 // pred_region
      %70 = dma.done [#allocation4], 64
    $region25: #{tpu_custom_call.1} parent=1 // pred_fallthru
      _
    %71 = vsyncpa [#allocation3], 1
    %72 = vsyncpa [#allocation6], 1
    %73 = vsyncpa [#allocation4], 1

</llo_original>
